<compile_context>
chip_gen: v5e
topology: v5e:2x2
jax: 0.10.0
libtpu: 0.0.40
codegen_flags: <defaults>
</compile_context>

<pallas_src>
import functools

import jax
import jax.numpy as jnp
from jax.experimental import pallas as pl
from jax.experimental.pallas import tpu as pltpu

_LANES = 128
_TARGET_BYTES_PER_STEP = 8 * 1024 * 1024   # ~8 MiB of real input data per grid step
_MIN_PALLAS_BYTES = 1 * 1024 * 1024        # below this a fused XLA reduction beats kernel dispatch
_CORE_SPLIT = 2                            # v7x: 2 TensorCores; harmless on 1-TC chips


def _cdiv(a, b):
    return -(-a // b)


def _round_up(x, m):
    return _cdiv(x, m) * m


def _sum_sq_kernel(ap_ref, ag_ref, xd_ref, xt_ref,
                   act_sum_ref, lat_sum_ref,
                   acc_act_ref, acc_lat_ref,
                   *, rows_act, rows_lat, block_act, block_lat, tiles_per_core):
    c = pl.program_id(0)   # core-split axis ("parallel": sharded across TCs on v7x)
    i = pl.program_id(1)   # accumulation axis ("arbitrary": sequential per core)

    @pl.when(i == 0)
    def _init():
        acc_act_ref[...] = jnp.zeros_like(acc_act_ref)
        acc_lat_ref[...] = jnp.zeros_like(acc_lat_ref)

    g = c * tiles_per_core + i   # logical (un-clamped) tile index

    f32 = jnp.float32
    da = ap_ref[...].astype(f32) - ag_ref[...].astype(f32)
    dx = xd_ref[...].astype(f32) - xt_ref[...].astype(f32)

    # Mask rows past the true row counts. Covers (a) the ragged last tile, whose DMA leaves
    # unspecified data in the tail of the VMEM block, and (b) surplus core-split tiles whose
    # index_map was clamped (their data is a duplicate and must contribute nothing).
    row_a = jax.lax.broadcasted_iota(jnp.int32, (block_act, 1), 0) + g * block_act
    row_l = jax.lax.broadcasted_iota(jnp.int32, (block_lat, 1), 0) + g * block_lat
    da2 = jnp.where(row_a < rows_act, da * da, 0.0)
    dx2 = jnp.where(row_l < rows_lat, dx * dx, 0.0)

    # Sublane-only partial reduction into lane-shaped VMEM accumulators (no per-step
    # cross-lane XLU reduce, no per-step SMEM scalar round-trip).
    acc_act_ref[...] += jnp.sum(da2, axis=0, keepdims=True)
    acc_lat_ref[...] += jnp.sum(dx2, axis=0, keepdims=True)

    @pl.when(i == tiles_per_core - 1)
    def _finalize():
        act_sum_ref[0, 0] = jnp.sum(acc_act_ref[...])
        lat_sum_ref[0, 0] = jnp.sum(acc_lat_ref[...])


def _lane_rows(x):
    """Lane-dense (rows, 128) view of x; zero-copy reshape when x.size % 128 == 0."""
    flat = x.reshape(-1)
    n = flat.shape[0]
    rows = _cdiv(n, _LANES)
    if n % _LANES != 0:
        # TODO(synk): rare fallback (size not a lane multiple) pays one pad copy; the common
        # batched case takes the free reshape so the kernel reads HBM exactly once.
        flat = jnp.pad(flat, (0, rows * _LANES - n))
    return flat.reshape(rows, _LANES)


def custom_loss(action_predicted, action_ground_truth, x_des, x_t, C, *, force_pallas=False):
    """Pallas-backed CustomLoss.forward -> (total_loss, loss_torques), both f32 scalars."""
    assert action_predicted.shape == action_ground_truth.shape
    assert x_des.shape == x_t.shape
    n_act = int(action_predicted.size)   # true element counts (trace-time constants)
    n_lat = int(x_des.size)
    total_bytes = sum(int(a.size) * a.dtype.itemsize
                      for a in (action_predicted, action_ground_truth, x_des, x_t))

    if not force_pallas and total_bytes < _MIN_PALLAS_BYTES:
        # Tiny inputs: a pallas_call pays us of dispatch + pipeline ramp; fused XLA wins.
        da = action_predicted.astype(jnp.float32) - action_ground_truth.astype(jnp.float32)
        dx = x_des.astype(jnp.float32) - x_t.astype(jnp.float32)
        loss_torques = jnp.mean(da * da)
        return loss_torques + C * jnp.mean(dx * dx), loss_torques

    ap = _lane_rows(action_predicted)
    ag = _lane_rows(action_ground_truth)
    xd = _lane_rows(x_des)
    xt = _lane_rows(x_t)
    rows_act = _cdiv(n_act, _LANES)
    rows_lat = _cdiv(n_lat, _LANES)

    # One grid step moves ~_TARGET_BYTES_PER_STEP of real data; the action pair gets its own
    # (smaller) block height so nothing is over-read.
    num_tiles = max(1, _cdiv(total_bytes, _TARGET_BYTES_PER_STEP))
    block_act = _round_up(_cdiv(rows_act, num_tiles), 8)
    block_lat = _round_up(_cdiv(rows_lat, num_tiles), 8)
    nblk_act = _cdiv(rows_act, block_act)
    nblk_lat = _cdiv(rows_lat, block_lat)

    lead = _CORE_SPLIT if num_tiles >= _CORE_SPLIT else 1
    tiles_per_core = _cdiv(num_tiles, lead)

    def _idx(nblk):
        # Clamp so surplus tiles never issue a fully out-of-bounds DMA; the kernel's row mask
        # (based on the un-clamped logical index) zeroes their contribution.
        return lambda c, i: (jnp.minimum(c * tiles_per_core + i, nblk - 1), 0)

    act_spec = pl.BlockSpec((block_act, _LANES), _idx(nblk_act))
    lat_spec = pl.BlockSpec((block_lat, _LANES), _idx(nblk_lat))
    out_spec = pl.BlockSpec((1, 1), lambda c, i: (c, 0), memory_space=pltpu.MemorySpace.SMEM)

    kernel = functools.partial(
        _sum_sq_kernel,
        rows_act=rows_act, rows_lat=rows_lat,
        block_act=block_act, block_lat=block_lat,
        tiles_per_core=tiles_per_core)

    act_part, lat_part = pl.pallas_call(
        kernel,
        out_shape=(jax.ShapeDtypeStruct((lead, 1), jnp.float32),
                   jax.ShapeDtypeStruct((lead, 1), jnp.float32)),
        grid_spec=pltpu.PrefetchScalarGridSpec(
            num_scalar_prefetch=0,
            grid=(lead, tiles_per_core),
            in_specs=[act_spec, act_spec, lat_spec, lat_spec],
            out_specs=(out_spec, out_spec),
            scratch_shapes=[pltpu.VMEM((1, _LANES), jnp.float32),
                            pltpu.VMEM((1, _LANES), jnp.float32)],
        ),
        compiler_params=pltpu.CompilerParams(
            dimension_semantics=("parallel", "arbitrary"),
            vmem_limit_bytes=32 * 1024 * 1024,   # v5e default is 16 MiB; block set needs ~16 MiB
        ),
    )(ap, ag, xd, xt)

    loss_torques = jnp.sum(act_part) / jnp.float32(n_act)
    mse_latent = jnp.sum(lat_part) / jnp.float32(n_lat)
    # C combined wrapper-side, so it may be a Python float or a traced JAX scalar.
    total = loss_torques + C * mse_latent
    return total, loss_torques


def _reference(ap, ag, xd, xt, C):
    ref_torq = jnp.mean((ap - ag) ** 2)
    ref_total = ref_torq + C * jnp.mean(jnp.mean((xd - xt) ** 2, axis=1))
    return ref_total, ref_torq


if __name__ == "__main__":
    key = jax.random.PRNGKey(0)
    k = jax.random.split(key, 8)

    # Canonical small shapes from the module: batch=2, action dim=8, latent dim=32.
    B, A, D = 2, 8, 32
    ap = jax.random.normal(k[0], (B, A), dtype=jnp.float32)
    ag = jax.random.normal(k[1], (B, A), dtype=jnp.float32)
    xd = jax.random.normal(k[2], (B, D), dtype=jnp.float32)
    xt = jax.random.normal(k[3], (B, D), dtype=jnp.float32)
    C = 0.5

    total, torq = custom_loss(ap, ag, xd, xt, C, force_pallas=True)   # exercise the kernel
    total = jax.block_until_ready(total)
    torq = jax.block_until_ready(torq)
    ref_total, ref_torq = _reference(ap, ag, xd, xt, C)
    assert jnp.allclose(total, ref_total, atol=1e-5), (total, ref_total)
    assert jnp.allclose(torq, ref_torq, atol=1e-5), (torq, ref_torq)

    # Larger batch: multi-tile accumulation, core-split grid, ragged last tiles, zero-copy path.
    B2 = 250_000
    ap2 = jax.random.normal(k[4], (B2, A), dtype=jnp.float32)
    ag2 = jax.random.normal(k[5], (B2, A), dtype=jnp.float32)
    xd2 = jax.random.normal(k[6], (B2, D), dtype=jnp.float32)
    xt2 = jax.random.normal(k[7], (B2, D), dtype=jnp.float32)
    total2, torq2 = custom_loss(ap2, ag2, xd2, xt2, C)
    total2 = jax.block_until_ready(total2)
    torq2 = jax.block_until_ready(torq2)
    ref_total2, ref_torq2 = _reference(ap2, ag2, xd2, xt2, C)
    assert jnp.allclose(total2, ref_total2, rtol=1e-4, atol=1e-4), (total2, ref_total2)
    assert jnp.allclose(torq2, ref_torq2, rtol=1e-4, atol=1e-4), (torq2, ref_torq2)

    print("KERNEL_OK")
</pallas_src>

<mosaic_0001>
module attributes {stable_mosaic.version = 11 : i64} {
  func.func @_sum_sq_kernel(%arg0: i32, %arg1: i32, %arg2: memref<8x128xf32, #tpu.memory_space<vmem>>, %arg3: memref<8x128xf32, #tpu.memory_space<vmem>>, %arg4: memref<8x128xf32, #tpu.memory_space<vmem>>, %arg5: memref<8x128xf32, #tpu.memory_space<vmem>>, %arg6: memref<1x1xf32, #tpu.memory_space<smem>>, %arg7: memref<1x1xf32, #tpu.memory_space<smem>>, %arg8: memref<1x128xf32, #tpu.memory_space<vmem>>, %arg9: memref<1x128xf32, #tpu.memory_space<vmem>>) attributes {dimension_semantics = [#tpu.dimension_semantics<parallel>, #tpu.dimension_semantics<arbitrary>], iteration_bounds = array<i64: 1, 1>, scalar_prefetch = 0 : i64, scratch_operands = 2 : i64, tpu.core_type = #tpu.core_type<tc>, window_params = [{transform_indices = @transform_0, window_bounds = array<i64: 8, 128>}, {transform_indices = @transform_1, window_bounds = array<i64: 8, 128>}, {transform_indices = @transform_2, window_bounds = array<i64: 8, 128>}, {transform_indices = @transform_3, window_bounds = array<i64: 8, 128>}, {transform_indices = @transform_4, window_bounds = array<i64: 1, 1>}, {transform_indices = @transform_5, window_bounds = array<i64: 1, 1>}]} {
    %c0_i32 = arith.constant 0 : i32
    %0 = arith.cmpi eq, %arg1, %c0_i32 : i32
    %1 = arith.extui %0 : i1 to i32
    %c0_i32_0 = arith.constant 0 : i32
    %2 = arith.cmpi ne, %1, %c0_i32_0 : i32
    scf.if %2 {
      %cst_24 = arith.constant 0.000000e+00 : f32
      %46 = vector.broadcast %cst_24 : f32 to vector<1x128xf32>
      %c0_25 = arith.constant 0 : index
      %c0_26 = arith.constant 0 : index
      %47 = vector.load %arg8[%c0_25, %c0_26] : memref<1x128xf32, #tpu.memory_space<vmem>>, vector<1x128xf32>
      tpu.vector_store %arg8[%c0_25, %c0_26], %46 {strides = array<i32>} : memref<1x128xf32, #tpu.memory_space<vmem>>, vector<1x128xf32>,
      %cst_27 = arith.constant 0.000000e+00 : f32
      %48 = vector.broadcast %cst_27 : f32 to vector<1x128xf32>
      %c0_28 = arith.constant 0 : index
      %c0_29 = arith.constant 0 : index
      %49 = vector.load %arg9[%c0_28, %c0_29] : memref<1x128xf32, #tpu.memory_space<vmem>>, vector<1x128xf32>
      tpu.vector_store %arg9[%c0_28, %c0_29], %48 {strides = array<i32>} : memref<1x128xf32, #tpu.memory_space<vmem>>, vector<1x128xf32>,
    } else {
    }
    %c1_i32 = arith.constant 1 : i32
    %3 = arith.muli %arg0, %c1_i32 : i32
    %4 = arith.addi %3, %arg1 : i32
    %c0 = arith.constant 0 : index
    %c0_1 = arith.constant 0 : index
    %5 = vector.load %arg2[%c0, %c0_1] : memref<8x128xf32, #tpu.memory_space<vmem>>, vector<8x128xf32>
    %c0_2 = arith.constant 0 : index
    %c0_3 = arith.constant 0 : index
    %6 = vector.load %arg3[%c0_2, %c0_3] : memref<8x128xf32, #tpu.memory_space<vmem>>, vector<8x128xf32>
    %7 = arith.subf %5, %6 : vector<8x128xf32>
    %c0_4 = arith.constant 0 : index
    %c0_5 = arith.constant 0 : index
    %8 = vector.load %arg4[%c0_4, %c0_5] : memref<8x128xf32, #tpu.memory_space<vmem>>, vector<8x128xf32>
    %c0_6 = arith.constant 0 : index
    %c0_7 = arith.constant 0 : index
    %9 = vector.load %arg5[%c0_6, %c0_7] : memref<8x128xf32, #tpu.memory_space<vmem>>, vector<8x128xf32>
    %10 = arith.subf %8, %9 : vector<8x128xf32>
    %11 = tpu.iota {dimensions = array<i32: 0>} : vector<8x1xi32>
    %c8_i32 = arith.constant 8 : i32
    %12 = arith.muli %4, %c8_i32 : i32
    %13 = vector.broadcast %12 : i32 to vector<8x1xi32>
    %14 = arith.addi %11, %13 : vector<8x1xi32>
    %15 = tpu.iota {dimensions = array<i32: 0>} : vector<8x1xi32>
    %c8_i32_8 = arith.constant 8 : i32
    %16 = arith.muli %4, %c8_i32_8 : i32
    %17 = vector.broadcast %16 : i32 to vector<8x1xi32>
    %18 = arith.addi %15, %17 : vector<8x1xi32>
    %c1_i32_9 = arith.constant 1 : i32
    %19 = vector.broadcast %c1_i32_9 : i32 to vector<8x1xi32>
    %20 = arith.cmpi slt, %14, %19 : vector<8x1xi32>
    %21 = arith.mulf %7, %7 : vector<8x128xf32>
    %cst = arith.constant 0.000000e+00 : f32
    %22 = vector.shape_cast %20 : vector<8x1xi1> to vector<8x1xi1>
    %23 = vector.broadcast %22 : vector<8x1xi1> to vector<8x128xi1>
    %24 = vector.broadcast %cst : f32 to vector<8x128xf32>
    %25 = arith.select %23, %21, %24 : vector<8x128xi1>, vector<8x128xf32>
    %c1_i32_10 = arith.constant 1 : i32
    %26 = vector.broadcast %c1_i32_10 : i32 to vector<8x1xi32>
    %27 = arith.cmpi slt, %18, %26 : vector<8x1xi32>
    %28 = arith.mulf %10, %10 : vector<8x128xf32>
    %cst_11 = arith.constant 0.000000e+00 : f32
    %29 = vector.shape_cast %27 : vector<8x1xi1> to vector<8x1xi1>
    %30 = vector.broadcast %29 : vector<8x1xi1> to vector<8x128xi1>
    %31 = vector.broadcast %cst_11 : f32 to vector<8x128xf32>
    %32 = arith.select %30, %28, %31 : vector<8x128xi1>, vector<8x128xf32>
    %c0_12 = arith.constant 0 : index
    %c0_13 = arith.constant 0 : index
    %33 = vector.load %arg8[%c0_12, %c0_13] : memref<1x128xf32, #tpu.memory_space<vmem>>, vector<1x128xf32>
    %cst_14 = arith.constant dense<0.000000e+00> : vector<128xf32>
    %34 = vector.multi_reduction <add>, %25, %cst_14 [0] : vector<8x128xf32> to vector<128xf32>
    %35 = vector.shape_cast %34 : vector<128xf32> to vector<1x128xf32>
    %36 = arith.addf %33, %35 : vector<1x128xf32>
    %c0_15 = arith.constant 0 : index
    %c0_16 = arith.constant 0 : index
    %37 = vector.load %arg8[%c0_15, %c0_16] : memref<1x128xf32, #tpu.memory_space<vmem>>, vector<1x128xf32>
    tpu.vector_store %arg8[%c0_15, %c0_16], %36 {strides = array<i32>} : memref<1x128xf32, #tpu.memory_space<vmem>>, vector<1x128xf32>,
    %c0_17 = arith.constant 0 : index
    %c0_18 = arith.constant 0 : index
    %38 = vector.load %arg9[%c0_17, %c0_18] : memref<1x128xf32, #tpu.memory_space<vmem>>, vector<1x128xf32>
    %cst_19 = arith.constant dense<0.000000e+00> : vector<128xf32>
    %39 = vector.multi_reduction <add>, %32, %cst_19 [0] : vector<8x128xf32> to vector<128xf32>
    %40 = vector.shape_cast %39 : vector<128xf32> to vector<1x128xf32>
    %41 = arith.addf %38, %40 : vector<1x128xf32>
    %c0_20 = arith.constant 0 : index
    %c0_21 = arith.constant 0 : index
    %42 = vector.load %arg9[%c0_20, %c0_21] : memref<1x128xf32, #tpu.memory_space<vmem>>, vector<1x128xf32>
    tpu.vector_store %arg9[%c0_20, %c0_21], %41 {strides = array<i32>} : memref<1x128xf32, #tpu.memory_space<vmem>>, vector<1x128xf32>,
    %c0_i32_22 = arith.constant 0 : i32
    %43 = arith.cmpi eq, %arg1, %c0_i32_22 : i32
    %44 = arith.extui %43 : i1 to i32
    %c0_i32_23 = arith.constant 0 : i32
    %45 = arith.cmpi ne, %44, %c0_i32_23 : i32
    scf.if %45 {
      %c0_24 = arith.constant 0 : index
      %c0_25 = arith.constant 0 : index
      %46 = vector.load %arg8[%c0_24, %c0_25] : memref<1x128xf32, #tpu.memory_space<vmem>>, vector<1x128xf32>
      %47 = vector.shape_cast %46 : vector<1x128xf32> to vector<1x1x128xf32>
      %cst_26 = arith.constant dense<0.000000e+00> : vector<1xf32>
      %48 = vector.multi_reduction <add>, %47, %cst_26 [1, 2] : vector<1x1x128xf32> to vector<1xf32>
      %49 = vector.shape_cast %48 : vector<1xf32> to vector<1x1x1xf32>
      %50 = vector.extract %49[0, 0, 0] : f32 from vector<1x1x1xf32>
      %c0_27 = arith.constant 0 : index
      %c0_28 = arith.constant 0 : index
      %51 = memref.load %arg6[%c0_27, %c0_28] : memref<1x1xf32, #tpu.memory_space<smem>>
      memref.store %50, %arg6[%c0_27, %c0_28] : memref<1x1xf32, #tpu.memory_space<smem>>
      %c0_29 = arith.constant 0 : index
      %c0_30 = arith.constant 0 : index
      %52 = vector.load %arg9[%c0_29, %c0_30] : memref<1x128xf32, #tpu.memory_space<vmem>>, vector<1x128xf32>
      %53 = vector.shape_cast %52 : vector<1x128xf32> to vector<1x1x128xf32>
      %cst_31 = arith.constant dense<0.000000e+00> : vector<1xf32>
      %54 = vector.multi_reduction <add>, %53, %cst_31 [1, 2] : vector<1x1x128xf32> to vector<1xf32>
      %55 = vector.shape_cast %54 : vector<1xf32> to vector<1x1x1xf32>
      %56 = vector.extract %55[0, 0, 0] : f32 from vector<1x1x1xf32>
      %c0_32 = arith.constant 0 : index
      %c0_33 = arith.constant 0 : index
      %57 = memref.load %arg7[%c0_32, %c0_33] : memref<1x1xf32, #tpu.memory_space<smem>>
      memref.store %56, %arg7[%c0_32, %c0_33] : memref<1x1xf32, #tpu.memory_space<smem>>
    } else {
    }
    return
  }
  func.func @transform_0(%arg0: i32, %arg1: i32) -> (i32, i32) {
    %c1_i32 = arith.constant 1 : i32
    %0 = arith.muli %arg0, %c1_i32 : i32
    %1 = arith.addi %0, %arg1 : i32
    %c0_i32 = arith.constant 0 : i32
    %2 = arith.minsi %1, %c0_i32 : i32
    %c0_i32_0 = arith.constant 0 : i32
    %c0_i32_1 = arith.constant 0 : i32
    return %2, %c0_i32_0 : i32, i32
  }
  func.func @transform_1(%arg0: i32, %arg1: i32) -> (i32, i32) {
    %c1_i32 = arith.constant 1 : i32
    %0 = arith.muli %arg0, %c1_i32 : i32
    %1 = arith.addi %0, %arg1 : i32
    %c0_i32 = arith.constant 0 : i32
    %2 = arith.minsi %1, %c0_i32 : i32
    %c0_i32_0 = arith.constant 0 : i32
    %c0_i32_1 = arith.constant 0 : i32
    return %2, %c0_i32_0 : i32, i32
  }
  func.func @transform_2(%arg0: i32, %arg1: i32) -> (i32, i32) {
    %c1_i32 = arith.constant 1 : i32
    %0 = arith.muli %arg0, %c1_i32 : i32
    %1 = arith.addi %0, %arg1 : i32
    %c0_i32 = arith.constant 0 : i32
    %2 = arith.minsi %1, %c0_i32 : i32
    %c0_i32_0 = arith.constant 0 : i32
    %c0_i32_1 = arith.constant 0 : i32
    return %2, %c0_i32_0 : i32, i32
  }
  func.func @transform_3(%arg0: i32, %arg1: i32) -> (i32, i32) {
    %c1_i32 = arith.constant 1 : i32
    %0 = arith.muli %arg0, %c1_i32 : i32
    %1 = arith.addi %0, %arg1 : i32
    %c0_i32 = arith.constant 0 : i32
    %2 = arith.minsi %1, %c0_i32 : i32
    %c0_i32_0 = arith.constant 0 : i32
    %c0_i32_1 = arith.constant 0 : i32
    return %2, %c0_i32_0 : i32, i32
  }
  func.func @transform_4(%arg0: i32, %arg1: i32) -> (i32, i32) {
    %c0_i32 = arith.constant 0 : i32
    %c0_i32_0 = arith.constant 0 : i32
    return %arg0, %c0_i32 : i32, i32
  }
  func.func @transform_5(%arg0: i32, %arg1: i32) -> (i32, i32) {
    %c0_i32 = arith.constant 0 : i32
    %c0_i32_0 = arith.constant 0 : i32
    return %arg0, %c0_i32 : i32, i32
  }
}

</mosaic_0001>

<llo_original>
// kernel: tpu_custom_call.1
$region0: #{tpu_custom_call.1}
  #allocation0 [shape = 'u32[]', space=smem, size = 0x4, offset = 0x4, fixed_abs, tag = 'smem constant byte address 0x4 - core index']
  #allocation1 [shape = 'u32[72,128]{1,0:T(1,128)}', space=vmem, size = 0x9000, scoped, tag = 'internal scratch']
  #allocation2 [shape = 'f32[1,128]{1,0:T(1,128)}', space=vmem, size = 0x200, scoped, tag = 'scratch operand']
  #allocation3 [shape = 'f32[1,128]{1,0:T(1,128)}', space=vmem, size = 0x200, scoped, tag = 'scratch operand']
  %s0 = inlined_call_operand.hbm [shape: f32[1,128], index: 0, kind: input, shape index: {}]
  %s1 = inlined_call_operand.hbm [shape: f32[1,128], index: 1, kind: input, shape index: {}]
  %s2 = inlined_call_operand.vmem [shape: f32[1,128], index: 2, kind: input, shape index: {}]
  %s3 = inlined_call_operand.vmem [shape: f32[1,128], index: 3, kind: input, shape index: {}]
  %s4 = inlined_call_operand.hbm [shape: f32[1,1], index: 4, kind: output, shape index: {0}]
  %s5 = inlined_call_operand.hbm [shape: f32[1,1], index: 5, kind: output, shape index: {1}]
  %6 = xla_tuple %s4, %s5
  %s7 = sld [smem:[#allocation0]]
  $region50: #{tpu_custom_call.1} parent=0
    _
  %s9 = ssub.s32 1, %s7
  %s10 = scalar_select 0, %s9, %s7
  $region1: #{tpu_custom_call.1} parent=0
    #allocation4 [shape = 'u8[4096]{0}', space=vmem, size = 0x1000, scoped, tag = 'input window, operand 0, single buffered']
    #allocation5 [shape = 's32[1]{0}', space=sflag, size = 0x4, scoped, tag = 'scoped memory for tpu_custom_call.1']
    #allocation6 [shape = 's32[1]{0}', space=sflag, size = 0x4, scoped, tag = 'scoped memory for tpu_custom_call.1']
    #allocation7 [shape = 'u8[4096]{0}', space=vmem, size = 0x1000, scoped, tag = 'input window, operand 1, single buffered']
    #allocation8 [shape = 's32[1]{0}', space=sflag, size = 0x4, scoped, tag = 'scoped memory for tpu_custom_call.1']
    #allocation9 [shape = 'u8[512]{0}', space=smem, size = 0x200, scoped, tag = 'output window, operand 0, single buffered']
    #allocation10 [shape = 'u8[512]{0}', space=smem, size = 0x200, scoped, tag = 'output window, operand 1, single buffered']
    #allocation11 [shape = 's32[1]{0}', space=sflag, size = 0x4, scoped, tag = 'scoped memory for tpu_custom_call.1']
    %11 = vsyncpa [#allocation5], 0
    %12 = vsyncpa [#allocation8], 0
    %13 = vsyncpa [#allocation6], 0
    %14 = vsyncpa [#allocation11], 0
    // Predicated region
    $region2: #{tpu_custom_call.1} parent=1 // pred_check
      _
    $region3: #{tpu_custom_call.1} parent=1 // pred_check_branch
      %16 = sbr.rel (0) target = $region5
    $region4: #{tpu_custom_call.1} parent=1 // pred_region
      %s17 = sadd.s32 0, 0
      %p18 = scmp.lt.s32.totalorder %s17, 0
      %s19 = scalar_select %p18, %s17, 0
      %s20 = smul.u32 8, %s19
      %s21 = ssub.s32 1, %s20
      %s22 = ssub.s32 8, %s21
      %s23 = sshll.u32 %s22, 4
      %24 = vsyncadd [#allocation5], %s23
      %p25 = scmp.ne.s32.totalorder 0, %s21
      %s26 = scalar_lea.hbm %s0, %s20
      %s27 = sshll.u32 %s26, 4
      %s28 = int_to_ptr.hbm [resolvable:$true] %s27
      %s29 = sshll.u32 [#allocation4], 4
      %s30 = int_to_ptr.vmem [resolvable:$true] %s29
      %s31 = sshll.u32 %s21, 4
      %35 = dma.hbm_to_vmem [thread:$0]  (%p25), %s28, %s31, %s30, [#allocation5], 16, 16, 1
    $region5: #{tpu_custom_call.1} parent=1 // pred_fallthru
      _
    // Predicated region
    $region6: #{tpu_custom_call.1} parent=1 // pred_check
      _
    $region7: #{tpu_custom_call.1} parent=1 // pred_check_branch
      %37 = sbr.rel (0) target = $region9
    $region8: #{tpu_custom_call.1} parent=1 // pred_region
      %s38 = sadd.s32 0, 0
      %p39 = scmp.lt.s32.totalorder %s38, 0
      %s40 = scalar_select %p39, %s38, 0
      %s41 = smul.u32 8, %s40
      %s42 = ssub.s32 1, %s41
      %s43 = ssub.s32 8, %s42
      %s44 = sshll.u32 %s43, 4
      %45 = vsyncadd [#allocation8], %s44
      %p46 = scmp.ne.s32.totalorder 0, %s42
      %s47 = scalar_lea.hbm %s1, %s41
      %s48 = sshll.u32 %s47, 4
      %s49 = int_to_ptr.hbm [resolvable:$true] %s48
      %s50 = sshll.u32 [#allocation7], 4
      %s51 = int_to_ptr.vmem [resolvable:$true] %s50
      %s52 = sshll.u32 %s42, 4
      %56 = dma.hbm_to_vmem [thread:$0]  (%p46), %s49, %s52, %s51, [#allocation8], 16, 16, 1
    $region9: #{tpu_custom_call.1} parent=1 // pred_fallthru
      _
    // Predicated region
    $region10: #{tpu_custom_call.1} parent=1 // pred_check
      _
    $region11: #{tpu_custom_call.1} parent=1 // pred_check_branch
      %58 = sbr.rel (0) target = $region13
    $region12: #{tpu_custom_call.1} parent=1 // pred_region
      %s59 = sadd.s32 0, 0
      %p60 = scmp.lt.s32.totalorder %s59, 0
      %s61 = scalar_select %p60, %s59, 0
      %s62 = smul.u32 8, %s61
      %s63 = ssub.s32 1, %s62
      %p64 = scmp.lt.s32.totalorder %s62, 0
      %s65 = scalar_select %p64, %s62, 0
      %s66 = scalar_lea.vmem %s2, %s65
      %s67 = sadd.s32 0, 0
      %p68 = scmp.lt.s32.totalorder %s67, 0
      %s69 = scalar_select %p68, %s67, 0
      %s70 = smul.u32 8, %s69
      %s71 = ssub.s32 1, %s70
    $region13: #{tpu_custom_call.1} parent=1 // pred_fallthru
      _
    // Predicated region
    $region14: #{tpu_custom_call.1} parent=1 // pred_check
      _
    $region15: #{tpu_custom_call.1} parent=1 // pred_check_branch
      %73 = sbr.rel (0) target = $region17
    $region16: #{tpu_custom_call.1} parent=1 // pred_region
      %s74 = sadd.s32 0, 0
      %p75 = scmp.lt.s32.totalorder %s74, 0
      %s76 = scalar_select %p75, %s74, 0
      %s77 = smul.u32 8, %s76
      %s78 = ssub.s32 1, %s77
      %p79 = scmp.lt.s32.totalorder %s77, 0
      %s80 = scalar_select %p79, %s77, 0
      %s81 = scalar_lea.vmem %s3, %s80
      %s82 = sadd.s32 0, 0
      %p83 = scmp.lt.s32.totalorder %s82, 0
      %s84 = scalar_select %p83, %s82, 0
      %s85 = smul.u32 8, %s84
      %s86 = ssub.s32 1, %s85
    $region17: #{tpu_custom_call.1} parent=1 // pred_fallthru
      _
    // Predicated region
    $region18: #{tpu_custom_call.1} parent=1 // pred_check
      _
    $region19: #{tpu_custom_call.1} parent=1 // pred_check_branch
      %88 = sbr.rel (0) target = $region21
    $region20: #{tpu_custom_call.1} parent=1 // pred_region
      %90 = dma.done [#allocation5], 128
    $region21: #{tpu_custom_call.1} parent=1 // pred_fallthru
      _
    // Predicated region
    $region22: #{tpu_custom_call.1} parent=1 // pred_check
      _
    $region23: #{tpu_custom_call.1} parent=1 // pred_check_branch
      %92 = sbr.rel (0) target = $region25
    $region24: #{tpu_custom_call.1} parent=1 // pred_region
      %94 = dma.done [#allocation8], 128
    $region25: #{tpu_custom_call.1} parent=1 // pred_fallthru
      _
    %s95 = sadd.s32 0, 0
    %p96 = scmp.lt.s32.totalorder %s95, 0
    %s97 = scalar_select %p96, %s95, 0
    %s98 = smul.u32 8, %s97
    %s99 = ssub.s32 1, %s98
    %p100 = scmp.lt.s32.totalorder %s98, 0
    %s101 = scalar_select %p100, %s98, 0
    %s102 = scalar_lea.vmem %s2, %s101
    %s103 = sadd.s32 0, 0
    %p104 = scmp.lt.s32.totalorder %s103, 0
    %s105 = scalar_select %p104, %s103, 0
    %s106 = smul.u32 8, %s105
    %s107 = ssub.s32 1, %s106
    %p108 = scmp.lt.s32.totalorder %s106, 0
    %s109 = scalar_select %p108, %s106, 0
    %s110 = scalar_lea.vmem %s3, %s109
    %s111 = sadd.s32 0, 0
    %p112 = scmp.lt.s32.totalorder %s111, 0
    %s113 = scalar_select %p112, %s111, 0
    %s114 = smul.u32 8, %s113
    %s115 = ssub.s32 1, %s114
    %s116 = sadd.s32 0, 0
    %p117 = scmp.lt.s32.totalorder %s116, 0
    %s118 = scalar_select %p117, %s116, 0
    %s119 = smul.u32 8, %s118
    %s120 = ssub.s32 1, %s119
    %s121 = sadd.s32 0, 0
    %p122 = scmp.lt.s32.totalorder %s121, 0
    %s123 = scalar_select %p122, %s121, 0
    %s124 = smul.u32 8, %s123
    %s125 = ssub.s32 1, %s124
    %p126 = scmp.lt.s32.totalorder %s124, 0
    %s127 = scalar_select %p126, %s124, 0
    %s128 = scalar_lea.vmem %s2, %s127
    %s129 = sadd.s32 0, 0
    %p130 = scmp.lt.s32.totalorder %s129, 0
    %s131 = scalar_select %p130, %s129, 0
    %s132 = smul.u32 8, %s131
    %s133 = ssub.s32 1, %s132
    %s134 = sadd.s32 0, 0
    %p135 = scmp.lt.s32.totalorder %s134, 0
    %s136 = scalar_select %p135, %s134, 0
    %s137 = smul.u32 8, %s136
    %s138 = ssub.s32 1, %s137
    %p139 = scmp.lt.s32.totalorder %s137, 0
    %s140 = scalar_select %p139, %s137, 0
    %s141 = scalar_lea.vmem %s3, %s140
    %s142 = sadd.s32 0, 0
    %p143 = scmp.lt.s32.totalorder %s142, 0
    %s144 = scalar_select %p143, %s142, 0
    %s145 = smul.u32 8, %s144
    %s146 = ssub.s32 1, %s145
    %p147 = scmp.eq.s32.totalorder 0, 0
    // Predicated region
    $region26: #{tpu_custom_call.1} parent=1 // pred_check
      %p148 = pneg %p147
    $region27: #{tpu_custom_call.1} parent=1 // pred_check_branch
      %150 = sbr.rel (%p148) target = $region29
    $region28: #{tpu_custom_call.1} parent=1 // pred_region
      %151 = vst [vmem:[#allocation2] sm:$0x1] 0.0
      %152 = vst [vmem:[#allocation3] sm:$0x1] 0.0
    $region29: #{tpu_custom_call.1} parent=1 // pred_fallthru
      _
    %s153 = sadd.s32 0, 0
    %v154 = vld [vmem:[#allocation4] sm:$0xff]
    %v155 = vld [vmem:[#allocation7] sm:$0xff]
    %v156 = vsub.f32 %v154, %v155
    %v157 = vld [vmem:[%s128] sm:$0xff]
    %v158 = vld [vmem:[%s141] sm:$0xff]
    %v159 = vsub.f32 %v157, %v158
    %v160 = vlaneseq
    %v161 = vshrl.u32 %v160, 7
    %s162 = smul.u32 %s153, 8
    %v163 = vstv %s162
    %v164 = vadd.s32 %v161, %v163
    %vm165 = vcmp.lt.s32.totalorder %v164, 1
    %v166 = vmul.f32 %v156, %v156
    %v167 = vsel %vm165, 1, 0
    %vm168 = vcmp.eq.s32.totalorder %v167, 1
    %v169 = vsel %vm168, %v166, 0.0
    %v170 = vmul.f32 %v159, %v159
    %v171 = vsel %vm168, %v170, 0.0
    %v172 = vld [vmem:[#allocation2] sm:$0x1]
    %v173 = vrot.slane %v169, 4
    %v174 = vadd.f32 %v169, %v173
    %v175 = vrot.slane %v174, 2
    %v176 = vadd.f32 %v174, %v175
    %v177 = vrot.slane %v176, 1
    %v178 = vadd.f32 %v176, %v177
    %v179 = vadd.f32 %v172, %v178
    %180 = vst [vmem:[#allocation2] sm:$0x1] %v179
    %v181 = vld [vmem:[#allocation3] sm:$0x1]
    %v182 = vrot.slane %v171, 4
    %v183 = vadd.f32 %v171, %v182
    %v184 = vrot.slane %v183, 2
    %v185 = vadd.f32 %v183, %v184
    %v186 = vrot.slane %v185, 1
    %v187 = vadd.f32 %v185, %v186
    %v188 = vadd.f32 %v181, %v187
    %189 = vst [vmem:[#allocation3] sm:$0x1] %v188
    // Predicated region
    $region30: #{tpu_custom_call.1} parent=1 // pred_check
      %p190 = pneg %p147
    $region31: #{tpu_custom_call.1} parent=1 // pred_check_branch
      %192 = sbr.rel (%p190) target = $region33
    $region32: #{tpu_custom_call.1} parent=1 // pred_region
      %v193 = vld [vmem:[#allocation2] sm:$0x1]
      %vm194 = vcmask 1040384
      %v195 = vsel %vm194, %v193, 0.0
      %196 = vadd.xlane.f32.xlu0 %v195
      %v197 = vpop.xlane.xlu0 %196
      %v198 = vrot.slane %v197, 4
      %v199 = vadd.f32 %v197, %v198
      %v200 = vrot.slane %v199, 2
      %v201 = vadd.f32 %v199, %v200
      %v202 = vrot.slane %v201, 1
      %v203 = vadd.f32 %v201, %v202
      %s204 = vtos %v203
      %s205 = scalar_lea.smem [#allocation9], 0
      %206 = sst [smem:[%s205]] %s204
      %v207 = vld [vmem:[#allocation3] sm:$0x1]
      %v208 = vsel %vm194, %v207, 0.0
      %209 = vadd.xlane.f32.xlu0 %v208
      %v210 = vpop.xlane.xlu0 %209
      %v211 = vrot.slane %v210, 4
      %v212 = vadd.f32 %v210, %v211
      %v213 = vrot.slane %v212, 2
      %v214 = vadd.f32 %v212, %v213
      %v215 = vrot.slane %v214, 1
      %v216 = vadd.f32 %v214, %v215
      %s217 = vtos %v216
      %s218 = scalar_lea.smem [#allocation10], 0
      %219 = sst [smem:[%s218]] %s217
    $region33: #{tpu_custom_call.1} parent=1 // pred_fallthru
      _
    // Predicated region
    $region34: #{tpu_custom_call.1} parent=1 // pred_check
      _
    $region35: #{tpu_custom_call.1} parent=1 // pred_check_branch
      %221 = sbr.rel (0) target = $region37
    $region36: #{tpu_custom_call.1} parent=1 // pred_region
      %223 = vsyncadd [#allocation6], 0
      %s225 = sshll.u32 %s4, 4
      %s226 = int_to_ptr.hbm [resolvable:$true] %s225
      %228 = dma.smem_to_hbm [#allocation9], 16, %s226, [#allocation6]
    $region37: #{tpu_custom_call.1} parent=1 // pred_fallthru
      _
    // Predicated region
    $region38: #{tpu_custom_call.1} parent=1 // pred_check
      _
    $region39: #{tpu_custom_call.1} parent=1 // pred_check_branch
      %230 = sbr.rel (0) target = $region41
    $region40: #{tpu_custom_call.1} parent=1 // pred_region
      %232 = vsyncadd [#allocation11], 0
      %s234 = sshll.u32 %s5, 4
      %s235 = int_to_ptr.hbm [resolvable:$true] %s234
      %237 = dma.smem_to_hbm [#allocation10], 16, %s235, [#allocation11]
    $region41: #{tpu_custom_call.1} parent=1 // pred_fallthru
      _
    // Predicated region
    $region42: #{tpu_custom_call.1} parent=1 // pred_check
      _
    $region43: #{tpu_custom_call.1} parent=1 // pred_check_branch
      %239 = sbr.rel (0) target = $region45
    $region44: #{tpu_custom_call.1} parent=1 // pred_region
      %241 = dma.done [#allocation6], 16
    $region45: #{tpu_custom_call.1} parent=1 // pred_fallthru
      _
    // Predicated region
    $region46: #{tpu_custom_call.1} parent=1 // pred_check
      _
    $region47: #{tpu_custom_call.1} parent=1 // pred_check_branch
      %243 = sbr.rel (0) target = $region49
    $region48: #{tpu_custom_call.1} parent=1 // pred_region
      %245 = dma.done [#allocation11], 16
    $region49: #{tpu_custom_call.1} parent=1 // pred_fallthru
      _
    %246 = sfence
    %247 = vsyncpa [#allocation5], 1
    %248 = vsyncpa [#allocation8], 1
    %249 = vsyncpa [#allocation6], 1
    %250 = vsyncpa [#allocation11], 1

</llo_original>
